<compile_context>
chip_gen: v5e
topology: v5e:2x2
jax: 0.10.0
libtpu: 0.0.40
codegen_flags: <defaults>
</compile_context>

<pallas_src>
import functools

import jax
import jax.numpy as jnp
from jax.experimental import pallas as pl
from jax.experimental.pallas import tpu as pltpu


# ----------------------------------------------------------------------------- fused kernel
def _fused_gin_kernel(h0_ref, adj_ref, w1_ref, b1_ref, w2_ref, b2_ref,
                      g_ref, bt_ref, pool_ref, dw1_ref, db1_ref, dw2_ref, db2_ref,
                      o_ref, h_scr,
                      *, num_layers, batch_norm, residual, res_first, eps_gin):
    layer = pl.program_id(0)

    # layer 0: load initial node features (atom || count encodings, zero-padded) into VMEM
    @pl.when(layer == 0)
    def _():
        h_scr[...] = h0_ref[...]

    h_in = h_scr[...]                                            # (N, Wp) fp32, resident

    # GIN sum aggregation: agg[i] = sum_j A[i, j] * h[j]  (bf16 MXU, fp32 accumulate)
    agg = jnp.dot(adj_ref[...], h_in.astype(jnp.bfloat16),
                  preferred_element_type=jnp.float32)
    if eps_gin == 0.0:
        z = h_in + agg
    else:
        z = (1.0 + eps_gin) * h_in + agg

    # GINConv apply-MLP: Linear -> ReLU -> Linear (bf16 operands, fp32 accumulation)
    y = jnp.dot(z.astype(jnp.bfloat16), w1_ref[...],
                preferred_element_type=jnp.float32) + b1_ref[...]
    y = jnp.maximum(y, 0.0)
    y = jnp.dot(y.astype(jnp.bfloat16), w2_ref[...],
                preferred_element_type=jnp.float32) + b2_ref[...]

    if batch_norm:
        # training-mode BatchNorm1d over the node axis, folded into one scale/shift pass
        mu = jnp.mean(y, axis=0, keepdims=True)
        ex2 = jnp.mean(y * y, axis=0, keepdims=True)
        var = ex2 - mu * mu
        scale = jax.lax.rsqrt(var + 1e-5) * g_ref[...]           # (1, Wp)
        shift = bt_ref[...] - mu * scale                         # (1, Wp)
        y = y * scale + shift

    y = jnp.maximum(y, 0.0)

    # residual: scalar-predicated on the layer index (no float-mask multiply)
    if residual and res_first:
        h_scr[...] = h_in + y                                    # in_dim == out_dim everywhere
    elif residual:
        @pl.when(layer == 0)
        def _():
            h_scr[...] = y                                       # layer 0: in_dim != out_dim
        @pl.when(layer > 0)
        def _():
            h_scr[...] = h_in + y
    else:
        h_scr[...] = y

    # last layer: graph readout (pooling matmul) + first two decoder linears
    @pl.when(layer == num_layers - 1)
    def _():
        h_fin = h_scr[...].astype(jnp.bfloat16)
        pooled = jnp.dot(pool_ref[...], h_fin,
                         preferred_element_type=jnp.float32)                     # (G, Wp)
        d = jnp.dot(pooled.astype(jnp.bfloat16), dw1_ref[...],
                    preferred_element_type=jnp.float32) + db1_ref[...]
        d = jnp.maximum(d, 0.0)
        d = jnp.dot(d.astype(jnp.bfloat16), dw2_ref[...],
                    preferred_element_type=jnp.float32) + db2_ref[...]
        d = jnp.maximum(d, 0.0)
        o_ref[...] = d


def fused_gin_forward(h0, adj_bf16, w1s, b1s, w2s, b2s, gms, bts, pool_bf16,
                      dw1p, db1, dw2, db2, *, batch_norm, residual, res_first):
    N, Wp = h0.shape
    L = w1s.shape[0]
    G = pool_bf16.shape[0]
    H2 = dw1p.shape[1]
    H4 = dw2.shape[1]

    kern = functools.partial(
        _fused_gin_kernel, num_layers=L, batch_norm=bool(batch_norm),
        residual=bool(residual), res_first=bool(res_first), eps_gin=0.0)

    flops = (L * (2 * N * N * Wp + 4 * N * Wp * Wp)
             + 2 * G * N * Wp + 2 * G * Wp * H2 + 2 * G * H2 * H4)
    bytes_accessed = (h0.size * 4 + adj_bf16.size * 2
                      + (w1s.size + w2s.size) * 2
                      + (b1s.size + b2s.size + gms.size + bts.size) * 4
                      + pool_bf16.size * 2
                      + (dw1p.size + dw2.size) * 2 + (db1.size + db2.size) * 4
                      + G * H4 * 4)

    const2 = lambda l: (0, 0)            # resident across the layer axis (DMA'd once)
    per_layer = lambda l: (l, 0, 0)      # stacked per-layer weights

    # scoped-VMEM budget sized from the actual blocks (x2 for default double buffering)
    per_layer_bytes = 2 * Wp * Wp * 2 + 4 * Wp * 4
    const_bytes = (N * Wp * 4 + N * N * 2 + G * N * 2
                   + Wp * H2 * 2 + H2 * 4 + H2 * H4 * 2 + H4 * 4 + G * H4 * 4)
    need = 2 * (per_layer_bytes + const_bytes) + N * Wp * 4
    vmem_limit = int(min(max(2 * need, 32 << 20), 64 << 20))

    return pl.pallas_call(
        kern,
        out_shape=jax.ShapeDtypeStruct((G, H4), jnp.float32),
        grid_spec=pltpu.PrefetchScalarGridSpec(
            num_scalar_prefetch=0,
            grid=(L,),
            in_specs=[
                pl.BlockSpec((N, Wp), const2),                       # h0 (fp32)
                pl.BlockSpec((N, N), const2),                        # adjacency (bf16)
                pl.BlockSpec((pl.Squeezed(), Wp, Wp), per_layer),    # w1 stacked (bf16)
                pl.BlockSpec((pl.Squeezed(), 1, Wp), per_layer),     # b1
                pl.BlockSpec((pl.Squeezed(), Wp, Wp), per_layer),    # w2 stacked (bf16)
                pl.BlockSpec((pl.Squeezed(), 1, Wp), per_layer),     # b2
                pl.BlockSpec((pl.Squeezed(), 1, Wp), per_layer),     # gamma
                pl.BlockSpec((pl.Squeezed(), 1, Wp), per_layer),     # beta
                pl.BlockSpec((G, N), const2),                        # pooling matrix (bf16)
                pl.BlockSpec((Wp, H2), const2),                      # decoder w1 (bf16, padded rows)
                pl.BlockSpec((1, H2), const2),                       # decoder b1
                pl.BlockSpec((H2, H4), const2),                      # decoder w2 (bf16)
                pl.BlockSpec((1, H4), const2),                       # decoder b2
            ],
            out_specs=pl.BlockSpec((G, H4), const2),
            scratch_shapes=[pltpu.VMEM((N, Wp), jnp.float32)],       # h accumulator across layers
        ),
        compiler_params=pltpu.CompilerParams(
            dimension_semantics=("arbitrary",),
            vmem_limit_bytes=vmem_limit),
        cost_estimate=pl.CostEstimate(flops=flops, transcendentals=0,
                                      bytes_accessed=bytes_accessed),
    )(h0, adj_bf16, w1s, b1s, w2s, b2s, gms, bts, pool_bf16, dw1p, db1, dw2, db2)


# ----------------------------------------------------------------------------- parameters
def _linear_params(key, fan_in, fan_out):
    kw, kb = jax.random.split(key)
    lim = 1.0 / jnp.sqrt(jnp.float32(fan_in))
    w = jax.random.uniform(kw, (fan_in, fan_out), jnp.float32, -lim, lim)
    b = jax.random.uniform(kb, (1, fan_out), jnp.float32, -lim, lim)
    return w, b


def init_params(key, hidden_dim, count_dim, num_layers):
    keys = jax.random.split(key, 16)
    params = {}
    params["emb"] = jax.random.normal(keys[0], (28, hidden_dim), jnp.float32)
    cw1, cb1 = _linear_params(keys[1], count_dim, count_dim)
    cw2, cb2 = _linear_params(keys[2], count_dim, count_dim)
    params["count_enc"] = (cw1, cb1, cw2, cb2)
    concat_dim = hidden_dim + count_dim if count_dim > 0 else hidden_dim
    convs = []
    in_dims = [concat_dim] + [hidden_dim] * (num_layers - 1)
    for li, d_in in enumerate(in_dims):
        k = jax.random.fold_in(keys[3], li)
        k1, k2 = jax.random.split(k)
        w1, b1 = _linear_params(k1, d_in, hidden_dim)
        w2, b2 = _linear_params(k2, hidden_dim, hidden_dim)
        gamma = jnp.ones((1, hidden_dim), jnp.float32)
        beta = jnp.zeros((1, hidden_dim), jnp.float32)
        convs.append((w1, b1, w2, b2, gamma, beta))
    params["convs"] = convs
    dw1, db1 = _linear_params(keys[4], hidden_dim, hidden_dim // 2)
    dw2, db2 = _linear_params(keys[5], hidden_dim // 2, hidden_dim // 4)
    dw3, db3 = _linear_params(keys[6], hidden_dim // 4, 1)
    params["decoder"] = (dw1, db1, dw2, db2, dw3, db3)
    return params


def _round_up(x, m):
    return ((x + m - 1) // m) * m


def pack_params(params, hidden_dim, count_dim, use_counts, lane_pad=128):
    """Stack per-layer weights into (L, ...) arrays, zero-padded to a lane-dense width Wp.

    Padded columns stay exactly zero through every layer: weight/bias/beta padding is 0 and
    gamma=1 padding hits the (mu=0, var=0) branch, so 0 -> 0.  Matmul weights are stored bf16.
    """
    has_counts = bool(use_counts) and count_dim > 0
    W = hidden_dim + count_dim if has_counts else hidden_dim
    Wp = _round_up(W, lane_pad)
    convs = params["convs"]
    L = len(convs)
    w1s = jnp.zeros((L, Wp, Wp), jnp.float32)
    b1s = jnp.zeros((L, 1, Wp), jnp.float32)
    w2s = jnp.zeros((L, Wp, Wp), jnp.float32)
    b2s = jnp.zeros((L, 1, Wp), jnp.float32)
    gms = jnp.ones((L, 1, Wp), jnp.float32)
    bts = jnp.zeros((L, 1, Wp), jnp.float32)
    for l, (w1, b1, w2, b2, g, bt) in enumerate(convs):
        d_in = w1.shape[0]
        w1s = w1s.at[l, :d_in, :hidden_dim].set(w1)
        b1s = b1s.at[l, :, :hidden_dim].set(b1)
        w2s = w2s.at[l, :hidden_dim, :hidden_dim].set(w2)
        b2s = b2s.at[l, :, :hidden_dim].set(b2)
        gms = gms.at[l, :, :hidden_dim].set(g)
        bts = bts.at[l, :, :hidden_dim].set(bt)
    dw1, db1, dw2, db2, dw3, db3 = params["decoder"]
    dw1p = jnp.zeros((Wp, dw1.shape[1]), jnp.float32).at[:hidden_dim, :].set(dw1)
    packed = (w1s.astype(jnp.bfloat16), b1s, w2s.astype(jnp.bfloat16), b2s,
              gms, bts, dw1p.astype(jnp.bfloat16), db1,
              dw2.astype(jnp.bfloat16), db2, dw3, db3)
    return packed, has_counts, W, Wp


# ----------------------------------------------------------------------------- forward
def gin_graph_reg_forward(params, x_idx, adj, counts, use_counts, pool_mat,
                          *, batch_norm=True, residual=True):
    hidden_dim = params["emb"].shape[1]
    count_dim = 0 if counts is None else counts.shape[1]
    has_counts = bool(use_counts) and count_dim > 0

    # glue: embedding lookup (+ squeeze), count-encoder MLP, concat — tiny, plain JAX
    atom_h = jnp.take(params["emb"], x_idx.reshape(-1), axis=0)          # (N, hidden)
    if has_counts:
        cw1, cb1, cw2, cb2 = params["count_enc"]
        ch = jnp.maximum(jnp.dot(counts, cw1) + cb1, 0.0)
        ch = jnp.dot(ch, cw2) + cb2
        h0 = jnp.concatenate([atom_h, ch], axis=1)                       # (N, W)
    else:
        h0 = atom_h

    packed, _, W, Wp = pack_params(params, hidden_dim, count_dim, use_counts)
    w1s, b1s, w2s, b2s, gms, bts, dw1p, db1, dw2, db2, dw3, db3 = packed

    N = h0.shape[0]
    if Wp != W:
        h0 = jnp.zeros((N, Wp), jnp.float32).at[:, :W].set(h0)           # lane-dense padding

    res_first = bool(residual) and (W == hidden_dim)
    d = fused_gin_forward(h0, adj.astype(jnp.bfloat16),
                          w1s, b1s, w2s, b2s, gms, bts,
                          pool_mat.astype(jnp.bfloat16),
                          dw1p, db1, dw2, db2,
                          batch_norm=batch_norm, residual=residual, res_first=res_first)

    # final 1-wide decoder projection in JAX (avoids a (G, 1) fully-masked store)
    return jnp.dot(d, dw3) + db3                                         # (G, 1)


# ----------------------------------------------------------------------------- pure-JAX reference
def _reference_forward(params, x_idx, adj, counts, use_counts, pool_mat,
                       *, batch_norm, residual):
    atom_h = jnp.take(params["emb"], x_idx.reshape(-1), axis=0)
    if use_counts and counts is not None and counts.shape[1] > 0:
        cw1, cb1, cw2, cb2 = params["count_enc"]
        ch = jnp.maximum(counts @ cw1 + cb1, 0.0) @ cw2 + cb2
        h = jnp.concatenate([atom_h, ch], axis=1)
    else:
        h = atom_h
    for (w1, b1, w2, b2, g, bt) in params["convs"]:
        h_in = h
        z = h + adj @ h
        y = jnp.maximum(z @ w1 + b1, 0.0) @ w2 + b2
        if batch_norm:
            mu = jnp.mean(y, axis=0, keepdims=True)
            var = jnp.mean((y - mu) ** 2, axis=0, keepdims=True)
            y = (y - mu) * jax.lax.rsqrt(var + 1e-5) * g + bt
        y = jnp.maximum(y, 0.0)
        if residual and h_in.shape[1] == y.shape[1]:
            y = h_in + y
        h = y
    pooled = pool_mat @ h
    dw1, db1, dw2, db2, dw3, db3 = params["decoder"]
    d = jnp.maximum(pooled @ dw1 + db1, 0.0)
    d = jnp.maximum(d @ dw2 + db2, 0.0)
    return d @ dw3 + db3


# ----------------------------------------------------------------------------- example
if __name__ == "__main__":
    hidden_dim, count_dim, num_layers = 32, 8, 3
    n_per_graph, num_graphs = 16, 2
    N = n_per_graph * num_graphs
    E_per_graph = 32

    key = jax.random.PRNGKey(0)
    kp, kx, kc, ke1, ke2 = jax.random.split(key, 5)
    params = init_params(kp, hidden_dim, count_dim, num_layers)

    # node atom indices (N, 1) — mirrors torch.squeeze after the Embedding
    x_idx = jax.random.randint(kx, (N, 1), 0, 28, jnp.int32)
    counts = jax.random.normal(kc, (N, count_dim), jnp.float32)

    # edge_index per graph, densified to adjacency A[dst, src] = multiplicity
    srcs, dsts = [], []
    for g in range(num_graphs):
        ks, kd = jax.random.split(jax.random.fold_in(ke1, g))
        s = jax.random.randint(ks, (E_per_graph,), 0, n_per_graph, jnp.int32) + g * n_per_graph
        d = jax.random.randint(kd, (E_per_graph,), 0, n_per_graph, jnp.int32) + g * n_per_graph
        srcs.append(s)
        dsts.append(d)
    src = jnp.concatenate(srcs)
    dst = jnp.concatenate(dsts)
    adj = jnp.zeros((N, N), jnp.float32).at[dst, src].add(1.0)

    # batch vector and mean-readout pooling matrix P (G, N)
    batch = jnp.repeat(jnp.arange(num_graphs, dtype=jnp.int32), n_per_graph)
    onehot = (batch[None, :] == jnp.arange(num_graphs)[:, None]).astype(jnp.float32)
    pool_mat = onehot / jnp.sum(onehot, axis=1, keepdims=True)   # 'mean' readout

    out = gin_graph_reg_forward(params, x_idx, adj, counts, True, pool_mat,
                                batch_norm=True, residual=True)
    out = jax.block_until_ready(out)
    assert out.shape == (num_graphs, 1)

    ref = _reference_forward(params, x_idx, adj, counts, True, pool_mat,
                             batch_norm=True, residual=True)
    ref = jax.block_until_ready(ref)
    # bf16 operands (weights + activations) in every kernel matmul -> ~1e-2 relative
    # deviation from the fp32 reference after 3 layers + BatchNorm; loose tolerance.
    assert jnp.allclose(out, ref, rtol=1e-1, atol=1e-1), (out, ref)

    print("KERNEL_OK")
</pallas_src>

<mosaic_0001>
module attributes {stable_mosaic.version = 11 : i64} {
  func.func @_fused_gin_kernel(%arg0: i32, %arg1: memref<32x128xf32, #tpu.memory_space<vmem>>, %arg2: memref<32x32xbf16, #tpu.memory_space<vmem>>, %arg3: memref<1x128x128xbf16, #tpu.memory_space<vmem>>, %arg4: memref<1x1x128xf32, #tpu.memory_space<vmem>>, %arg5: memref<1x128x128xbf16, #tpu.memory_space<vmem>>, %arg6: memref<1x1x128xf32, #tpu.memory_space<vmem>>, %arg7: memref<1x1x128xf32, #tpu.memory_space<vmem>>, %arg8: memref<1x1x128xf32, #tpu.memory_space<vmem>>, %arg9: memref<2x32xbf16, #tpu.memory_space<vmem>>, %arg10: memref<128x16xbf16, #tpu.memory_space<vmem>>, %arg11: memref<1x16xf32, #tpu.memory_space<vmem>>, %arg12: memref<16x8xbf16, #tpu.memory_space<vmem>>, %arg13: memref<1x8xf32, #tpu.memory_space<vmem>>, %arg14: memref<2x8xf32, #tpu.memory_space<vmem>>, %arg15: memref<32x128xf32, #tpu.memory_space<vmem>>) attributes {dimension_semantics = [#tpu.dimension_semantics<arbitrary>], iteration_bounds = array<i64: 3>, scalar_prefetch = 0 : i64, scratch_operands = 1 : i64, tpu.core_type = #tpu.core_type<tc>, window_params = [{pipeline_mode = #tpu.pipeline_mode<synchronous>, transform_indices = @transform_0, window_bounds = array<i64: 32, 128>}, {pipeline_mode = #tpu.pipeline_mode<synchronous>, transform_indices = @transform_1, window_bounds = array<i64: 32, 32>}, {transform_indices = @transform_2, window_bounds = array<i64: 1, 128, 128>}, {transform_indices = @transform_3, window_bounds = array<i64: 1, 1, 128>}, {transform_indices = @transform_4, window_bounds = array<i64: 1, 128, 128>}, {transform_indices = @transform_5, window_bounds = array<i64: 1, 1, 128>}, {transform_indices = @transform_6, window_bounds = array<i64: 1, 1, 128>}, {transform_indices = @transform_7, window_bounds = array<i64: 1, 1, 128>}, {pipeline_mode = #tpu.pipeline_mode<synchronous>, transform_indices = @transform_8, window_bounds = array<i64: 2, 32>}, {pipeline_mode = #tpu.pipeline_mode<synchronous>, transform_indices = @transform_9, window_bounds = array<i64: 128, 16>}, {pipeline_mode = #tpu.pipeline_mode<synchronous>, transform_indices = @transform_10, window_bounds = array<i64: 1, 16>}, {pipeline_mode = #tpu.pipeline_mode<synchronous>, transform_indices = @transform_11, window_bounds = array<i64: 16, 8>}, {pipeline_mode = #tpu.pipeline_mode<synchronous>, transform_indices = @transform_12, window_bounds = array<i64: 1, 8>}, {pipeline_mode = #tpu.pipeline_mode<synchronous>, transform_indices = @transform_13, window_bounds = array<i64: 2, 8>}]} {
    %c0_i32 = arith.constant 0 : i32
    %0 = arith.cmpi eq, %arg0, %c0_i32 : i32
    %1 = arith.extui %0 : i1 to i32
    %c0_i32_0 = arith.constant 0 : i32
    %2 = arith.cmpi ne, %1, %c0_i32_0 : i32
    scf.if %2 {
      %c0_36 = arith.constant 0 : index
      %c0_37 = arith.constant 0 : index
      %62 = vector.load %arg1[%c0_36, %c0_37] : memref<32x128xf32, #tpu.memory_space<vmem>>, vector<32x128xf32>
      %c0_38 = arith.constant 0 : index
      %c0_39 = arith.constant 0 : index
      %63 = vector.load %arg15[%c0_38, %c0_39] : memref<32x128xf32, #tpu.memory_space<vmem>>, vector<32x128xf32>
      tpu.vector_store %arg15[%c0_38, %c0_39], %62 {strides = array<i32>} : memref<32x128xf32, #tpu.memory_space<vmem>>, vector<32x128xf32>,
    } else {
    }
    %c0 = arith.constant 0 : index
    %c0_1 = arith.constant 0 : index
    %3 = vector.load %arg15[%c0, %c0_1] : memref<32x128xf32, #tpu.memory_space<vmem>>, vector<32x128xf32>
    %c0_2 = arith.constant 0 : index
    %c0_3 = arith.constant 0 : index
    %4 = vector.load %arg2[%c0_2, %c0_3] : memref<32x32xbf16, #tpu.memory_space<vmem>>, vector<32x32xbf16>
    %5 = arith.truncf %3 : vector<32x128xf32> to vector<32x128xbf16>
    %cst = arith.constant dense<0.000000e+00> : vector<32x128xf32>
    %6 = tpu.matmul %4, %5, %cst {dimension_numbers = #tpu.dot_dimension_numbers<[1], [0], [0], [1], [0, 0, 1, 1], [], []>} : vector<32x32xbf16>, vector<32x128xbf16>, vector<32x128xf32> -> vector<32x128xf32>
    %7 = arith.addf %3, %6 : vector<32x128xf32>
    %8 = arith.truncf %7 : vector<32x128xf32> to vector<32x128xbf16>
    %c0_4 = arith.constant 0 : index
    %c0_5 = arith.constant 0 : index
    %c0_6 = arith.constant 0 : index
    %9 = vector.load %arg3[%c0_4, %c0_5, %c0_6] : memref<1x128x128xbf16, #tpu.memory_space<vmem>>, vector<1x128x128xbf16>
    %10 = vector.shape_cast %9 : vector<1x128x128xbf16> to vector<128x128xbf16>
    %cst_7 = arith.constant dense<0.000000e+00> : vector<32x128xf32>
    %11 = tpu.matmul %8, %10, %cst_7 {dimension_numbers = #tpu.dot_dimension_numbers<[1], [0], [0], [1], [0, 0, 1, 1], [], []>} : vector<32x128xbf16>, vector<128x128xbf16>, vector<32x128xf32> -> vector<32x128xf32>
    %c0_8 = arith.constant 0 : index
    %c0_9 = arith.constant 0 : index
    %c0_10 = arith.constant 0 : index
    %12 = vector.load %arg4[%c0_8, %c0_9, %c0_10] : memref<1x1x128xf32, #tpu.memory_space<vmem>>, vector<1x1x128xf32>
    %13 = vector.shape_cast %12 : vector<1x1x128xf32> to vector<1x128xf32>
    %14 = vector.broadcast %13 : vector<1x128xf32> to vector<32x128xf32>
    %15 = arith.addf %11, %14 : vector<32x128xf32>
    %cst_11 = arith.constant 0.000000e+00 : f32
    %16 = vector.broadcast %cst_11 : f32 to vector<32x128xf32>
    %17 = arith.maximumf %15, %16 : vector<32x128xf32>
    %18 = arith.truncf %17 : vector<32x128xf32> to vector<32x128xbf16>
    %c0_12 = arith.constant 0 : index
    %c0_13 = arith.constant 0 : index
    %c0_14 = arith.constant 0 : index
    %19 = vector.load %arg5[%c0_12, %c0_13, %c0_14] : memref<1x128x128xbf16, #tpu.memory_space<vmem>>, vector<1x128x128xbf16>
    %20 = vector.shape_cast %19 : vector<1x128x128xbf16> to vector<128x128xbf16>
    %cst_15 = arith.constant dense<0.000000e+00> : vector<32x128xf32>
    %21 = tpu.matmul %18, %20, %cst_15 {dimension_numbers = #tpu.dot_dimension_numbers<[1], [0], [0], [1], [0, 0, 1, 1], [], []>} : vector<32x128xbf16>, vector<128x128xbf16>, vector<32x128xf32> -> vector<32x128xf32>
    %c0_16 = arith.constant 0 : index
    %c0_17 = arith.constant 0 : index
    %c0_18 = arith.constant 0 : index
    %22 = vector.load %arg6[%c0_16, %c0_17, %c0_18] : memref<1x1x128xf32, #tpu.memory_space<vmem>>, vector<1x1x128xf32>
    %23 = vector.shape_cast %22 : vector<1x1x128xf32> to vector<1x128xf32>
    %24 = vector.broadcast %23 : vector<1x128xf32> to vector<32x128xf32>
    %25 = arith.addf %21, %24 : vector<32x128xf32>
    %cst_19 = arith.constant dense<0.000000e+00> : vector<128xf32>
    %26 = vector.multi_reduction <add>, %25, %cst_19 [0] : vector<32x128xf32> to vector<128xf32>
    %27 = vector.shape_cast %26 : vector<128xf32> to vector<1x128xf32>
    %cst_20 = arith.constant 3.200000e+01 : f32
    %28 = vector.broadcast %cst_20 : f32 to vector<1x128xf32>
    %29 = arith.divf %27, %28 : vector<1x128xf32>
    %30 = arith.mulf %25, %25 : vector<32x128xf32>
    %cst_21 = arith.constant dense<0.000000e+00> : vector<128xf32>
    %31 = vector.multi_reduction <add>, %30, %cst_21 [0] : vector<32x128xf32> to vector<128xf32>
    %32 = vector.shape_cast %31 : vector<128xf32> to vector<1x128xf32>
    %cst_22 = arith.constant 3.200000e+01 : f32
    %33 = vector.broadcast %cst_22 : f32 to vector<1x128xf32>
    %34 = arith.divf %32, %33 : vector<1x128xf32>
    %35 = arith.mulf %29, %29 : vector<1x128xf32>
    %36 = arith.subf %34, %35 : vector<1x128xf32>
    %cst_23 = arith.constant 9.99999974E-6 : f32
    %37 = vector.broadcast %cst_23 : f32 to vector<1x128xf32>
    %38 = arith.addf %36, %37 : vector<1x128xf32>
    %39 = math.rsqrt %38 : vector<1x128xf32>
    %c0_24 = arith.constant 0 : index
    %c0_25 = arith.constant 0 : index
    %c0_26 = arith.constant 0 : index
    %40 = vector.load %arg7[%c0_24, %c0_25, %c0_26] : memref<1x1x128xf32, #tpu.memory_space<vmem>>, vector<1x1x128xf32>
    %41 = vector.shape_cast %40 : vector<1x1x128xf32> to vector<1x128xf32>
    %42 = arith.mulf %39, %41 : vector<1x128xf32>
    %c0_27 = arith.constant 0 : index
    %c0_28 = arith.constant 0 : index
    %c0_29 = arith.constant 0 : index
    %43 = vector.load %arg8[%c0_27, %c0_28, %c0_29] : memref<1x1x128xf32, #tpu.memory_space<vmem>>, vector<1x1x128xf32>
    %44 = vector.shape_cast %43 : vector<1x1x128xf32> to vector<1x128xf32>
    %45 = arith.mulf %29, %42 : vector<1x128xf32>
    %46 = arith.subf %44, %45 : vector<1x128xf32>
    %47 = vector.broadcast %42 : vector<1x128xf32> to vector<32x128xf32>
    %48 = arith.mulf %25, %47 : vector<32x128xf32>
    %49 = vector.broadcast %46 : vector<1x128xf32> to vector<32x128xf32>
    %50 = arith.addf %48, %49 : vector<32x128xf32>
    %cst_30 = arith.constant 0.000000e+00 : f32
    %51 = vector.broadcast %cst_30 : f32 to vector<32x128xf32>
    %52 = arith.maximumf %50, %51 : vector<32x128xf32>
    %c0_i32_31 = arith.constant 0 : i32
    %53 = arith.cmpi eq, %arg0, %c0_i32_31 : i32
    %54 = arith.extui %53 : i1 to i32
    %c0_i32_32 = arith.constant 0 : i32
    %55 = arith.cmpi ne, %54, %c0_i32_32 : i32
    scf.if %55 {
      %c0_36 = arith.constant 0 : index
      %c0_37 = arith.constant 0 : index
      %62 = vector.load %arg15[%c0_36, %c0_37] : memref<32x128xf32, #tpu.memory_space<vmem>>, vector<32x128xf32>
      tpu.vector_store %arg15[%c0_36, %c0_37], %52 {strides = array<i32>} : memref<32x128xf32, #tpu.memory_space<vmem>>, vector<32x128xf32>,
    } else {
    }
    %c0_i32_33 = arith.constant 0 : i32
    %56 = arith.cmpi sgt, %arg0, %c0_i32_33 : i32
    %57 = arith.extui %56 : i1 to i32
    %c0_i32_34 = arith.constant 0 : i32
    %58 = arith.cmpi ne, %57, %c0_i32_34 : i32
    scf.if %58 {
      %62 = arith.addf %3, %52 : vector<32x128xf32>
      %c0_36 = arith.constant 0 : index
      %c0_37 = arith.constant 0 : index
      %63 = vector.load %arg15[%c0_36, %c0_37] : memref<32x128xf32, #tpu.memory_space<vmem>>, vector<32x128xf32>
      tpu.vector_store %arg15[%c0_36, %c0_37], %62 {strides = array<i32>} : memref<32x128xf32, #tpu.memory_space<vmem>>, vector<32x128xf32>,
    } else {
    }
    %c2_i32 = arith.constant 2 : i32
    %59 = arith.cmpi eq, %arg0, %c2_i32 : i32
    %60 = arith.extui %59 : i1 to i32
    %c0_i32_35 = arith.constant 0 : i32
    %61 = arith.cmpi ne, %60, %c0_i32_35 : i32
    scf.if %61 {
      %c0_36 = arith.constant 0 : index
      %c0_37 = arith.constant 0 : index
      %62 = vector.load %arg15[%c0_36, %c0_37] : memref<32x128xf32, #tpu.memory_space<vmem>>, vector<32x128xf32>
      %63 = arith.truncf %62 : vector<32x128xf32> to vector<32x128xbf16>
      %c0_38 = arith.constant 0 : index
      %c0_39 = arith.constant 0 : index
      %64 = vector.load %arg9[%c0_38, %c0_39] : memref<2x32xbf16, #tpu.memory_space<vmem>>, vector<2x32xbf16>
      %cst_40 = arith.constant dense<0.000000e+00> : vector<2x128xf32>
      %65 = tpu.matmul %64, %63, %cst_40 {dimension_numbers = #tpu.dot_dimension_numbers<[1], [0], [0], [1], [0, 0, 1, 1], [], []>} : vector<2x32xbf16>, vector<32x128xbf16>, vector<2x128xf32> -> vector<2x128xf32>
      %66 = arith.truncf %65 : vector<2x128xf32> to vector<2x128xbf16>
      %c0_41 = arith.constant 0 : index
      %c0_42 = arith.constant 0 : index
      %67 = vector.load %arg10[%c0_41, %c0_42] : memref<128x16xbf16, #tpu.memory_space<vmem>>, vector<128x16xbf16>
      %cst_43 = arith.constant dense<0.000000e+00> : vector<2x16xf32>
      %68 = tpu.matmul %66, %67, %cst_43 {dimension_numbers = #tpu.dot_dimension_numbers<[1], [0], [0], [1], [0, 0, 1, 1], [], []>} : vector<2x128xbf16>, vector<128x16xbf16>, vector<2x16xf32> -> vector<2x16xf32>
      %c0_44 = arith.constant 0 : index
      %c0_45 = arith.constant 0 : index
      %69 = vector.load %arg11[%c0_44, %c0_45] : memref<1x16xf32, #tpu.memory_space<vmem>>, vector<1x16xf32>
      %70 = vector.broadcast %69 : vector<1x16xf32> to vector<2x16xf32>
      %71 = arith.addf %68, %70 : vector<2x16xf32>
      %cst_46 = arith.constant 0.000000e+00 : f32
      %72 = vector.broadcast %cst_46 : f32 to vector<2x16xf32>
      %73 = arith.maximumf %71, %72 : vector<2x16xf32>
      %74 = arith.truncf %73 : vector<2x16xf32> to vector<2x16xbf16>
      %c0_47 = arith.constant 0 : index
      %c0_48 = arith.constant 0 : index
      %75 = vector.load %arg12[%c0_47, %c0_48] : memref<16x8xbf16, #tpu.memory_space<vmem>>, vector<16x8xbf16>
      %cst_49 = arith.constant dense<0.000000e+00> : vector<2x8xf32>
      %76 = tpu.matmul %74, %75, %cst_49 {dimension_numbers = #tpu.dot_dimension_numbers<[1], [0], [0], [1], [0, 0, 1, 1], [], []>} : vector<2x16xbf16>, vector<16x8xbf16>, vector<2x8xf32> -> vector<2x8xf32>
      %c0_50 = arith.constant 0 : index
      %c0_51 = arith.constant 0 : index
      %77 = vector.load %arg13[%c0_50, %c0_51] : memref<1x8xf32, #tpu.memory_space<vmem>>, vector<1x8xf32>
      %78 = vector.broadcast %77 : vector<1x8xf32> to vector<2x8xf32>
      %79 = arith.addf %76, %78 : vector<2x8xf32>
      %cst_52 = arith.constant 0.000000e+00 : f32
      %80 = vector.broadcast %cst_52 : f32 to vector<2x8xf32>
      %81 = arith.maximumf %79, %80 : vector<2x8xf32>
      %c0_53 = arith.constant 0 : index
      %c0_54 = arith.constant 0 : index
      %82 = vector.load %arg14[%c0_53, %c0_54] : memref<2x8xf32, #tpu.memory_space<vmem>>, vector<2x8xf32>
      tpu.vector_store %arg14[%c0_53, %c0_54], %81 {strides = array<i32>} : memref<2x8xf32, #tpu.memory_space<vmem>>, vector<2x8xf32>,
    } else {
    }
    return
  }
  func.func @transform_0(%arg0: i32) -> (i32, i32) {
    %c0_i32 = arith.constant 0 : i32
    %c0_i32_0 = arith.constant 0 : i32
    %c0_i32_1 = arith.constant 0 : i32
    return %c0_i32, %c0_i32_0 : i32, i32
  }
  func.func @transform_1(%arg0: i32) -> (i32, i32) {
    %c0_i32 = arith.constant 0 : i32
    %c0_i32_0 = arith.constant 0 : i32
    %c0_i32_1 = arith.constant 0 : i32
    return %c0_i32, %c0_i32_0 : i32, i32
  }
  func.func @transform_2(%arg0: i32) -> (i32, i32, i32) {
    %c0_i32 = arith.constant 0 : i32
    %c0_i32_0 = arith.constant 0 : i32
    %c0_i32_1 = arith.constant 0 : i32
    return %arg0, %c0_i32, %c0_i32_0 : i32, i32, i32
  }
  func.func @transform_3(%arg0: i32) -> (i32, i32, i32) {
    %c0_i32 = arith.constant 0 : i32
    %c0_i32_0 = arith.constant 0 : i32
    %c0_i32_1 = arith.constant 0 : i32
    return %arg0, %c0_i32, %c0_i32_0 : i32, i32, i32
  }
  func.func @transform_4(%arg0: i32) -> (i32, i32, i32) {
    %c0_i32 = arith.constant 0 : i32
    %c0_i32_0 = arith.constant 0 : i32
    %c0_i32_1 = arith.constant 0 : i32
    return %arg0, %c0_i32, %c0_i32_0 : i32, i32, i32
  }
  func.func @transform_5(%arg0: i32) -> (i32, i32, i32) {
    %c0_i32 = arith.constant 0 : i32
    %c0_i32_0 = arith.constant 0 : i32
    %c0_i32_1 = arith.constant 0 : i32
    return %arg0, %c0_i32, %c0_i32_0 : i32, i32, i32
  }
  func.func @transform_6(%arg0: i32) -> (i32, i32, i32) {
    %c0_i32 = arith.constant 0 : i32
    %c0_i32_0 = arith.constant 0 : i32
    %c0_i32_1 = arith.constant 0 : i32
    return %arg0, %c0_i32, %c0_i32_0 : i32, i32, i32
  }
  func.func @transform_7(%arg0: i32) -> (i32, i32, i32) {
    %c0_i32 = arith.constant 0 : i32
    %c0_i32_0 = arith.constant 0 : i32
    %c0_i32_1 = arith.constant 0 : i32
    return %arg0, %c0_i32, %c0_i32_0 : i32, i32, i32
  }
  func.func @transform_8(%arg0: i32) -> (i32, i32) {
    %c0_i32 = arith.constant 0 : i32
    %c0_i32_0 = arith.constant 0 : i32
    %c0_i32_1 = arith.constant 0 : i32
    return %c0_i32, %c0_i32_0 : i32, i32
  }
  func.func @transform_9(%arg0: i32) -> (i32, i32) {
    %c0_i32 = arith.constant 0 : i32
    %c0_i32_0 = arith.constant 0 : i32
    %c0_i32_1 = arith.constant 0 : i32
    return %c0_i32, %c0_i32_0 : i32, i32
  }
  func.func @transform_10(%arg0: i32) -> (i32, i32) {
    %c0_i32 = arith.constant 0 : i32
    %c0_i32_0 = arith.constant 0 : i32
    %c0_i32_1 = arith.constant 0 : i32
    return %c0_i32, %c0_i32_0 : i32, i32
  }
  func.func @transform_11(%arg0: i32) -> (i32, i32) {
    %c0_i32 = arith.constant 0 : i32
    %c0_i32_0 = arith.constant 0 : i32
    %c0_i32_1 = arith.constant 0 : i32
    return %c0_i32, %c0_i32_0 : i32, i32
  }
  func.func @transform_12(%arg0: i32) -> (i32, i32) {
    %c0_i32 = arith.constant 0 : i32
    %c0_i32_0 = arith.constant 0 : i32
    %c0_i32_1 = arith.constant 0 : i32
    return %c0_i32, %c0_i32_0 : i32, i32
  }
  func.func @transform_13(%arg0: i32) -> (i32, i32) {
    %c0_i32 = arith.constant 0 : i32
    %c0_i32_0 = arith.constant 0 : i32
    %c0_i32_1 = arith.constant 0 : i32
    return %c0_i32, %c0_i32_0 : i32, i32
  }
}

</mosaic_0001>

<llo_original>
// kernel: tpu_custom_call.1
$region0: #{tpu_custom_call.1}
  #allocation0 [shape = 'u32[]', space=smem, size = 0x4, offset = 0x4, fixed_abs, tag = 'smem constant byte address 0x4 - core index']
  #allocation1 [shape = 'u32[72,128]{1,0:T(1,128)}', space=vmem, size = 0x9000, scoped, tag = 'internal scratch']
  #allocation2 [shape = 'f32[32,128]{1,0:T(8,128)}', space=vmem, size = 0x4000, scoped, tag = 'scratch operand']
  %s0 = inlined_call_operand.vmem [shape: f32[32,128], index: 0, kind: input, shape index: {}]
  %s1 = inlined_call_operand.vmem [shape: bf16[32,32], index: 1, kind: input, shape index: {}]
  %s2 = inlined_call_operand.hbm [shape: bf16[3,128,128], index: 2, kind: input, shape index: {}]
  %s3 = inlined_call_operand.vmem [shape: f32[3,1,128], index: 3, kind: input, shape index: {}]
  %s4 = inlined_call_operand.hbm [shape: bf16[3,128,128], index: 4, kind: input, shape index: {}]
  %s5 = inlined_call_operand.vmem [shape: f32[3,1,128], index: 5, kind: input, shape index: {}]
  %s6 = inlined_call_operand.vmem [shape: f32[3,1,128], index: 6, kind: input, shape index: {}]
  %s7 = inlined_call_operand.vmem [shape: f32[3,1,128], index: 7, kind: input, shape index: {}]
  %s8 = inlined_call_operand.vmem [shape: bf16[2,32], index: 8, kind: input, shape index: {}]
  %s9 = inlined_call_operand.vmem [shape: bf16[128,16], index: 9, kind: input, shape index: {}]
  %s10 = inlined_call_operand.vmem [shape: f32[1,16], index: 10, kind: input, shape index: {}]
  %s11 = inlined_call_operand.vmem [shape: bf16[16,8], index: 11, kind: input, shape index: {}]
  %s12 = inlined_call_operand.vmem [shape: f32[1,8], index: 12, kind: input, shape index: {}]
  %s13 = inlined_call_operand.hbm [shape: f32[2,8], index: 13, kind: output, shape index: {}]
  %s14 = sld [smem:[#allocation0]]
  $region109: #{tpu_custom_call.1} parent=0
    _
  %s16 = ssub.s32 1, %s14
  %s17 = scalar_select 0, %s16, %s14
  $region1: #{tpu_custom_call.1} parent=0
    #allocation3 [shape = 'u8[65536]{0}', space=vmem, size = 0x10000, scoped, tag = 'input window, operand 2']
    #allocation4 [shape = 's32[2]{0}', space=sflag, size = 0x8, scoped, tag = 'scoped memory for tpu_custom_call.1']
    #allocation5 [shape = 's32[2]{0}', space=sflag, size = 0x8, scoped, tag = 'scoped memory for tpu_custom_call.1']
    #allocation6 [shape = 'u8[65536]{0}', space=vmem, size = 0x10000, scoped, tag = 'input window, operand 4']
    #allocation7 [shape = 's32[2]{0}', space=sflag, size = 0x8, scoped, tag = 'scoped memory for tpu_custom_call.1']
    #allocation8 [shape = 'u8[1024]{0}', space=vmem, size = 0x400, scoped, tag = 'output window, operand 0, single buffered']
    %18 = vsyncpa [#allocation4], 0
    %s19 = scalar_lea.sflag [#allocation4], 1
    %20 = vsyncpa %s19, 0
    %21 = vsyncpa [#allocation7], 0
    %s22 = scalar_lea.sflag [#allocation7], 1
    %23 = vsyncpa %s22, 0
    %24 = vsyncpa [#allocation5], 0
    loop: start=0, step=1, limit=5
    $region2: #{tpu_custom_call.1} parent=1 // loop_pre_header
      _
    $region3: #{tpu_custom_call.1} parent=1 // loop_header
      %s26 = sphi 0, %s30
      %p27 = scmp.ge.s32.totalorder %s26, 5
      %s34 = sphi 0, %s34
      %s36 = sphi 0, %s34
      %s37 = sphi 0, %s36
      %s51 = sphi 0, %s37
      %s55 = sphi 0, %s55
      %s57 = sphi 0, %s55
      %s58 = sphi 0, %s57
      %s72 = sphi 0, %s58
      %s78 = sphi 0, %s80
      %s81 = sphi 0, %s78
      %s82 = sphi 0, %s81
      %s98 = sphi 0, %s82
      %s104 = sphi 0, %s106
      %s107 = sphi 0, %s104
      %s108 = sphi 0, %s107
      %s124 = sphi 0, %s108
      %s130 = sphi 0, %s132
      %s133 = sphi 0, %s130
      %s134 = sphi 0, %s133
      %s150 = sphi 0, %s134
      %s156 = sphi 0, %s158
      %s159 = sphi 0, %s156
      %s160 = sphi 0, %s159
      %s176 = sphi 0, %s160
      %s182 = sphi 0, %s184
      %s185 = sphi 0, %s182
      %s186 = sphi 0, %s185
      %s202 = sphi 0, %s186
      %s208 = sphi 0, %s210
      %s211 = sphi 0, %s208
      %s212 = sphi 0, %s211
      %s228 = sphi 0, %s212
      %s232 = sphi 0, %s232
      %s234 = sphi 0, %s232
      %s235 = sphi 0, %s234
      %s249 = sphi 0, %s235
      %s253 = sphi 0, %s253
      %s255 = sphi 0, %s253
      %s256 = sphi 0, %s255
      %s270 = sphi 0, %s256
      %s274 = sphi 0, %s274
      %s276 = sphi 0, %s274
      %s277 = sphi 0, %s276
      %s291 = sphi 0, %s277
      %s295 = sphi 0, %s295
      %s297 = sphi 0, %s295
      %s298 = sphi 0, %s297
      %s312 = sphi 0, %s298
      %s316 = sphi 0, %s316
      %s318 = sphi 0, %s316
      %s319 = sphi 0, %s318
      %s333 = sphi 0, %s319
      %s337 = sphi 0, %s337
      %s339 = sphi 0, %s337
      %s340 = sphi 0, %s339
      %s354 = sphi 0, %s340
    $region4: #{tpu_custom_call.1} parent=1 // loop_header_branch
      %29 = sbr.rel (%p27) target = $region8
    $region5: #{tpu_custom_call.1} parent=1 // loop_body
      %s31 = ssub.s32 %s26, 1
      %s32 = ssub.s32 %s26, 2
      %s33 = sadd.s32 %s26, 1
      %s35 = sadd.s32 %s34, 1
      %p38 = scmp.eq.s32.totalorder %s26, 2
      %p39 = scmp.ne.s32.totalorder %s34, %s36
      %p40 = scmp.eq.s32.totalorder %s26, 0
      %p41 = por %p39, %p40
      %p42 = scmp.ne.s32.totalorder %s34, %s36
      %p43 = scmp.eq.s32.totalorder %s31, 2
      %p44 = por %p42, %p43
      %p45 = scmp.ne.s32.totalorder %s36, %s37
      %p46 = scmp.eq.s32.totalorder %s31, 0
      %p47 = por %p45, %p46
      %p48 = scmp.ne.s32.totalorder %s36, %s37
      %p49 = scmp.eq.s32.totalorder %s32, 2
      %p50 = por %p48, %p49
      %p52 = scmp.ne.s32.totalorder %s37, %s51
      %p53 = scmp.eq.s32.totalorder %s32, 0
      %p54 = por %p52, %p53
      %s56 = sadd.s32 %s55, 1
      %p59 = scmp.eq.s32.totalorder %s26, 2
      %p60 = scmp.ne.s32.totalorder %s55, %s57
      %p61 = scmp.eq.s32.totalorder %s26, 0
      %p62 = por %p60, %p61
      %p63 = scmp.ne.s32.totalorder %s55, %s57
      %p64 = scmp.eq.s32.totalorder %s31, 2
      %p65 = por %p63, %p64
      %p66 = scmp.ne.s32.totalorder %s57, %s58
      %p67 = scmp.eq.s32.totalorder %s31, 0
      %p68 = por %p66, %p67
      %p69 = scmp.ne.s32.totalorder %s57, %s58
      %p70 = scmp.eq.s32.totalorder %s32, 2
      %p71 = por %p69, %p70
      %p73 = scmp.ne.s32.totalorder %s58, %s72
      %p74 = scmp.eq.s32.totalorder %s32, 0
      %p75 = por %p73, %p74
      %s76 = ssub.s32 %s26, %s33
      %p77 = scmp.eq.s32.totalorder %s76, 0
      %s79 = sadd.s32 %s78, 1
      %s80 = scalar_select %p77, %s78, %s79
      %p83 = pneg %p77
      %p84 = scmp.eq.s32.totalorder %s26, 2
      %p85 = por %p83, %p84
      %p86 = scmp.ne.s32.totalorder %s78, %s81
      %p87 = scmp.eq.s32.totalorder %s26, 0
      %p88 = por %p86, %p87
      %p89 = scmp.ne.s32.totalorder %s78, %s81
      %p90 = scmp.eq.s32.totalorder %s31, 2
      %p91 = por %p89, %p90
      %p92 = scmp.ne.s32.totalorder %s81, %s82
      %p93 = scmp.eq.s32.totalorder %s31, 0
      %p94 = por %p92, %p93
      %p95 = scmp.ne.s32.totalorder %s81, %s82
      %p96 = scmp.eq.s32.totalorder %s32, 2
      %p97 = por %p95, %p96
      %p99 = scmp.ne.s32.totalorder %s82, %s98
      %p100 = scmp.eq.s32.totalorder %s32, 0
      %p101 = por %p99, %p100
      %s102 = ssub.s32 %s26, %s33
      %p103 = scmp.eq.s32.totalorder %s102, 0
      %s105 = sadd.s32 %s104, 1
      %s106 = scalar_select %p103, %s104, %s105
      %p109 = pneg %p103
      %p110 = scmp.eq.s32.totalorder %s26, 2
      %p111 = por %p109, %p110
      %p112 = scmp.ne.s32.totalorder %s104, %s107
      %p113 = scmp.eq.s32.totalorder %s26, 0
      %p114 = por %p112, %p113
      %p115 = scmp.ne.s32.totalorder %s104, %s107
      %p116 = scmp.eq.s32.totalorder %s31, 2
      %p117 = por %p115, %p116
      %p118 = scmp.ne.s32.totalorder %s107, %s108
      %p119 = scmp.eq.s32.totalorder %s31, 0
      %p120 = por %p118, %p119
      %p121 = scmp.ne.s32.totalorder %s107, %s108
      %p122 = scmp.eq.s32.totalorder %s32, 2
      %p123 = por %p121, %p122
      %p125 = scmp.ne.s32.totalorder %s108, %s124
      %p126 = scmp.eq.s32.totalorder %s32, 0
      %p127 = por %p125, %p126
      %s128 = ssub.s32 %s26, %s33
      %p129 = scmp.eq.s32.totalorder %s128, 0
      %s131 = sadd.s32 %s130, 1
      %s132 = scalar_select %p129, %s130, %s131
      %p135 = pneg %p129
      %p136 = scmp.eq.s32.totalorder %s26, 2
      %p137 = por %p135, %p136
      %p138 = scmp.ne.s32.totalorder %s130, %s133
      %p139 = scmp.eq.s32.totalorder %s26, 0
      %p140 = por %p138, %p139
      %p141 = scmp.ne.s32.totalorder %s130, %s133
      %p142 = scmp.eq.s32.totalorder %s31, 2
      %p143 = por %p141, %p142
      %p144 = scmp.ne.s32.totalorder %s133, %s134
      %p145 = scmp.eq.s32.totalorder %s31, 0
      %p146 = por %p144, %p145
      %p147 = scmp.ne.s32.totalorder %s133, %s134
      %p148 = scmp.eq.s32.totalorder %s32, 2
      %p149 = por %p147, %p148
      %p151 = scmp.ne.s32.totalorder %s134, %s150
      %p152 = scmp.eq.s32.totalorder %s32, 0
      %p153 = por %p151, %p152
      %s154 = ssub.s32 %s26, %s33
      %p155 = scmp.eq.s32.totalorder %s154, 0
      %s157 = sadd.s32 %s156, 1
      %s158 = scalar_select %p155, %s156, %s157
      %p161 = pneg %p155
      %p162 = scmp.eq.s32.totalorder %s26, 2
      %p163 = por %p161, %p162
      %p164 = scmp.ne.s32.totalorder %s156, %s159
      %p165 = scmp.eq.s32.totalorder %s26, 0
      %p166 = por %p164, %p165
      %p167 = scmp.ne.s32.totalorder %s156, %s159
      %p168 = scmp.eq.s32.totalorder %s31, 2
      %p169 = por %p167, %p168
      %p170 = scmp.ne.s32.totalorder %s159, %s160
      %p171 = scmp.eq.s32.totalorder %s31, 0
      %p172 = por %p170, %p171
      %p173 = scmp.ne.s32.totalorder %s159, %s160
      %p174 = scmp.eq.s32.totalorder %s32, 2
      %p175 = por %p173, %p174
      %p177 = scmp.ne.s32.totalorder %s160, %s176
      %p178 = scmp.eq.s32.totalorder %s32, 0
      %p179 = por %p177, %p178
      %s180 = ssub.s32 %s26, %s33
      %p181 = scmp.eq.s32.totalorder %s180, 0
      %s183 = sadd.s32 %s182, 1
      %s184 = scalar_select %p181, %s182, %s183
      %p187 = pneg %p181
      %p188 = scmp.eq.s32.totalorder %s26, 2
      %p189 = por %p187, %p188
      %p190 = scmp.ne.s32.totalorder %s182, %s185
      %p191 = scmp.eq.s32.totalorder %s26, 0
      %p192 = por %p190, %p191
      %p193 = scmp.ne.s32.totalorder %s182, %s185
      %p194 = scmp.eq.s32.totalorder %s31, 2
      %p195 = por %p193, %p194
      %p196 = scmp.ne.s32.totalorder %s185, %s186
      %p197 = scmp.eq.s32.totalorder %s31, 0
      %p198 = por %p196, %p197
      %p199 = scmp.ne.s32.totalorder %s185, %s186
      %p200 = scmp.eq.s32.totalorder %s32, 2
      %p201 = por %p199, %p200
      %p203 = scmp.ne.s32.totalorder %s186, %s202
      %p204 = scmp.eq.s32.totalorder %s32, 0
      %p205 = por %p203, %p204
      %s206 = ssub.s32 %s26, %s33
      %p207 = scmp.eq.s32.totalorder %s206, 0
      %s209 = sadd.s32 %s208, 1
      %s210 = scalar_select %p207, %s208, %s209
      %p213 = pneg %p207
      %p214 = scmp.eq.s32.totalorder %s26, 2
      %p215 = por %p213, %p214
      %p216 = scmp.ne.s32.totalorder %s208, %s211
      %p217 = scmp.eq.s32.totalorder %s26, 0
      %p218 = por %p216, %p217
      %p219 = scmp.ne.s32.totalorder %s208, %s211
      %p220 = scmp.eq.s32.totalorder %s31, 2
      %p221 = por %p219, %p220
      %p222 = scmp.ne.s32.totalorder %s211, %s212
      %p223 = scmp.eq.s32.totalorder %s31, 0
      %p224 = por %p222, %p223
      %p225 = scmp.ne.s32.totalorder %s211, %s212
      %p226 = scmp.eq.s32.totalorder %s32, 2
      %p227 = por %p225, %p226
      %p229 = scmp.ne.s32.totalorder %s212, %s228
      %p230 = scmp.eq.s32.totalorder %s32, 0
      %p231 = por %p229, %p230
      %s233 = sadd.s32 %s232, 1
      %p236 = scmp.eq.s32.totalorder %s26, 2
      %p237 = scmp.ne.s32.totalorder %s232, %s234
      %p238 = scmp.eq.s32.totalorder %s26, 0
      %p239 = por %p237, %p238
      %p240 = scmp.ne.s32.totalorder %s232, %s234
      %p241 = scmp.eq.s32.totalorder %s31, 2
      %p242 = por %p240, %p241
      %p243 = scmp.ne.s32.totalorder %s234, %s235
      %p244 = scmp.eq.s32.totalorder %s31, 0
      %p245 = por %p243, %p244
      %p246 = scmp.ne.s32.totalorder %s234, %s235
      %p247 = scmp.eq.s32.totalorder %s32, 2
      %p248 = por %p246, %p247
      %p250 = scmp.ne.s32.totalorder %s235, %s249
      %p251 = scmp.eq.s32.totalorder %s32, 0
      %p252 = por %p250, %p251
      %s254 = sadd.s32 %s253, 1
      %p257 = scmp.eq.s32.totalorder %s26, 2
      %p258 = scmp.ne.s32.totalorder %s253, %s255
      %p259 = scmp.eq.s32.totalorder %s26, 0
      %p260 = por %p258, %p259
      %p261 = scmp.ne.s32.totalorder %s253, %s255
      %p262 = scmp.eq.s32.totalorder %s31, 2
      %p263 = por %p261, %p262
      %p264 = scmp.ne.s32.totalorder %s255, %s256
      %p265 = scmp.eq.s32.totalorder %s31, 0
      %p266 = por %p264, %p265
      %p267 = scmp.ne.s32.totalorder %s255, %s256
      %p268 = scmp.eq.s32.totalorder %s32, 2
      %p269 = por %p267, %p268
      %p271 = scmp.ne.s32.totalorder %s256, %s270
      %p272 = scmp.eq.s32.totalorder %s32, 0
      %p273 = por %p271, %p272
      %s275 = sadd.s32 %s274, 1
      %p278 = scmp.eq.s32.totalorder %s26, 2
      %p279 = scmp.ne.s32.totalorder %s274, %s276
      %p280 = scmp.eq.s32.totalorder %s26, 0
      %p281 = por %p279, %p280
      %p282 = scmp.ne.s32.totalorder %s274, %s276
      %p283 = scmp.eq.s32.totalorder %s31, 2
      %p284 = por %p282, %p283
      %p285 = scmp.ne.s32.totalorder %s276, %s277
      %p286 = scmp.eq.s32.totalorder %s31, 0
      %p287 = por %p285, %p286
      %p288 = scmp.ne.s32.totalorder %s276, %s277
      %p289 = scmp.eq.s32.totalorder %s32, 2
      %p290 = por %p288, %p289
      %p292 = scmp.ne.s32.totalorder %s277, %s291
      %p293 = scmp.eq.s32.totalorder %s32, 0
      %p294 = por %p292, %p293
      %s296 = sadd.s32 %s295, 1
      %p299 = scmp.eq.s32.totalorder %s26, 2
      %p300 = scmp.ne.s32.totalorder %s295, %s297
      %p301 = scmp.eq.s32.totalorder %s26, 0
      %p302 = por %p300, %p301
      %p303 = scmp.ne.s32.totalorder %s295, %s297
      %p304 = scmp.eq.s32.totalorder %s31, 2
      %p305 = por %p303, %p304
      %p306 = scmp.ne.s32.totalorder %s297, %s298
      %p307 = scmp.eq.s32.totalorder %s31, 0
      %p308 = por %p306, %p307
      %p309 = scmp.ne.s32.totalorder %s297, %s298
      %p310 = scmp.eq.s32.totalorder %s32, 2
      %p311 = por %p309, %p310
      %p313 = scmp.ne.s32.totalorder %s298, %s312
      %p314 = scmp.eq.s32.totalorder %s32, 0
      %p315 = por %p313, %p314
      %s317 = sadd.s32 %s316, 1
      %p320 = scmp.eq.s32.totalorder %s26, 2
      %p321 = scmp.ne.s32.totalorder %s316, %s318
      %p322 = scmp.eq.s32.totalorder %s26, 0
      %p323 = por %p321, %p322
      %p324 = scmp.ne.s32.totalorder %s316, %s318
      %p325 = scmp.eq.s32.totalorder %s31, 2
      %p326 = por %p324, %p325
      %p327 = scmp.ne.s32.totalorder %s318, %s319
      %p328 = scmp.eq.s32.totalorder %s31, 0
      %p329 = por %p327, %p328
      %p330 = scmp.ne.s32.totalorder %s318, %s319
      %p331 = scmp.eq.s32.totalorder %s32, 2
      %p332 = por %p330, %p331
      %p334 = scmp.ne.s32.totalorder %s319, %s333
      %p335 = scmp.eq.s32.totalorder %s32, 0
      %p336 = por %p334, %p335
      %s338 = sadd.s32 %s337, 1
      %p341 = scmp.eq.s32.totalorder %s26, 2
      %p342 = scmp.ne.s32.totalorder %s337, %s339
      %p343 = scmp.eq.s32.totalorder %s26, 0
      %p344 = por %p342, %p343
      %p345 = scmp.ne.s32.totalorder %s337, %s339
      %p346 = scmp.eq.s32.totalorder %s31, 2
      %p347 = por %p345, %p346
      %p348 = scmp.ne.s32.totalorder %s339, %s340
      %p349 = scmp.eq.s32.totalorder %s31, 0
      %p350 = por %p348, %p349
      %p351 = scmp.ne.s32.totalorder %s339, %s340
      %p352 = scmp.eq.s32.totalorder %s32, 2
      %p353 = por %p351, %p352
      %p355 = scmp.ne.s32.totalorder %s340, %s354
      %p356 = scmp.eq.s32.totalorder %s32, 0
      %p357 = por %p355, %p356
      %p358 = scmp.le.s32.totalorder 1, %s26
      %p359 = scmp.lt.s32.totalorder %s26, 4
      %p360 = pnand %p358, %p359
      %p361 = pneg %p360
      // Predicated region
      $region9: #{tpu_custom_call.1} parent=5 // pred_check
        _
      $region10: #{tpu_custom_call.1} parent=5 // pred_check_branch
        %363 = sbr.rel (%p360) target = $region12
      $region11: #{tpu_custom_call.1} parent=5 // pred_region
        %s364 = ssub.s32 %s26, 1
        // Predicated region
        $region13: #{tpu_custom_call.1} parent=11 // pred_check
          %p365 = pneg %p47
        $region14: #{tpu_custom_call.1} parent=11 // pred_check_branch
          %367 = sbr.rel (%p365) target = $region16
        $region15: #{tpu_custom_call.1} parent=11 // pred_region
          _
        $region16: #{tpu_custom_call.1} parent=11 // pred_fallthru
          _
        // Predicated region
        $region17: #{tpu_custom_call.1} parent=11 // pred_check
          %p368 = pneg %p68
        $region18: #{tpu_custom_call.1} parent=11 // pred_check_branch
          %370 = sbr.rel (%p368) target = $region20
        $region19: #{tpu_custom_call.1} parent=11 // pred_region
          _
        $region20: #{tpu_custom_call.1} parent=11 // pred_fallthru
          _
        // Predicated region
        $region21: #{tpu_custom_call.1} parent=11 // pred_check
          %p371 = pneg %p245
        $region22: #{tpu_custom_call.1} parent=11 // pred_check_branch
          %373 = sbr.rel (%p371) target = $region24
        $region23: #{tpu_custom_call.1} parent=11 // pred_region
          _
        $region24: #{tpu_custom_call.1} parent=11 // pred_fallthru
          _
        // Predicated region
        $region25: #{tpu_custom_call.1} parent=11 // pred_check
          %p374 = pneg %p266
        $region26: #{tpu_custom_call.1} parent=11 // pred_check_branch
          %376 = sbr.rel (%p374) target = $region28
        $region27: #{tpu_custom_call.1} parent=11 // pred_region
          _
        $region28: #{tpu_custom_call.1} parent=11 // pred_fallthru
          _
        // Predicated region
        $region29: #{tpu_custom_call.1} parent=11 // pred_check
          %p377 = pneg %p287
        $region30: #{tpu_custom_call.1} parent=11 // pred_check_branch
          %379 = sbr.rel (%p377) target = $region32
        $region31: #{tpu_custom_call.1} parent=11 // pred_region
          _
        $region32: #{tpu_custom_call.1} parent=11 // pred_fallthru
          _
        // Predicated region
        $region33: #{tpu_custom_call.1} parent=11 // pred_check
          %p380 = pneg %p308
        $region34: #{tpu_custom_call.1} parent=11 // pred_check_branch
          %382 = sbr.rel (%p380) target = $region36
        $region35: #{tpu_custom_call.1} parent=11 // pred_region
          _
        $region36: #{tpu_custom_call.1} parent=11 // pred_fallthru
          _
        // Predicated region
        $region37: #{tpu_custom_call.1} parent=11 // pred_check
          %p383 = pneg %p329
        $region38: #{tpu_custom_call.1} parent=11 // pred_check_branch
          %385 = sbr.rel (%p383) target = $region40
        $region39: #{tpu_custom_call.1} parent=11 // pred_region
          _
        $region40: #{tpu_custom_call.1} parent=11 // pred_fallthru
          _
      $region12: #{tpu_custom_call.1} parent=5 // pred_fallthru
        _
      %p386 = scmp.lt.s32.totalorder %s26, 3
      // Predicated region
      $region41: #{tpu_custom_call.1} parent=5 // pred_check
        %p387 = pneg %p386
      $region42: #{tpu_custom_call.1} parent=5 // pred_check_branch
        %389 = sbr.rel (%p387) target = $region44
      $region43: #{tpu_custom_call.1} parent=5 // pred_region
        // Predicated region
        $region45: #{tpu_custom_call.1} parent=43 // pred_check
          %p390 = pneg %p88
        $region46: #{tpu_custom_call.1} parent=43 // pred_check_branch
          %392 = sbr.rel (%p390) target = $region48
        $region47: #{tpu_custom_call.1} parent=43 // pred_region
          %s393 = sand.u32 %s78, 1
          %s394 = scalar_lea.sflag [#allocation4], %s393
          %s395 = sand.u32 %s78, 1
          %s396 = smul.addr %s395, 64
          %s397 = scalar_lea.vmem [#allocation3], %s396
          %399 = vsyncadd %s394, 0
          %s400 = smul.addr %s26, 16
          %s401 = smul.addr %s400, 4
          %s402 = scalar_lea.hbm %s2, %s401
          %s403 = sshll.u32 %s402, 4
          %s404 = int_to_ptr.hbm [resolvable:$true] %s403
          %s405 = sshll.u32 %s397, 4
          %s406 = int_to_ptr.vmem [resolvable:$true] %s405
          %411 = dma.hbm_to_vmem [thread:$0]  %s404, 1024, %s406, %s394, 64, 64, 4
        $region48: #{tpu_custom_call.1} parent=43 // pred_fallthru
          _
        // Predicated region
        $region49: #{tpu_custom_call.1} parent=43 // pred_check
          %p412 = pneg %p114
        $region50: #{tpu_custom_call.1} parent=43 // pred_check_branch
          %414 = sbr.rel (%p412) target = $region52
        $region51: #{tpu_custom_call.1} parent=43 // pred_region
          %p415 = scmp.lt.s32.totalorder %s26, 2
          %s416 = scalar_select %p415, %s26, 2
          %s417 = scalar_lea.vmem %s3, %s416
        $region52: #{tpu_custom_call.1} parent=43 // pred_fallthru
          _
        // Predicated region
        $region53: #{tpu_custom_call.1} parent=43 // pred_check
          %p418 = pneg %p140
        $region54: #{tpu_custom_call.1} parent=43 // pred_check_branch
          %420 = sbr.rel (%p418) target = $region56
        $region55: #{tpu_custom_call.1} parent=43 // pred_region
          %s421 = sand.u32 %s130, 1
          %s422 = scalar_lea.sflag [#allocation7], %s421
          %s423 = sand.u32 %s130, 1
          %s424 = smul.addr %s423, 64
          %s425 = scalar_lea.vmem [#allocation6], %s424
          %427 = vsyncadd %s422, 0
          %s428 = smul.addr %s26, 16
          %s429 = smul.addr %s428, 4
          %s430 = scalar_lea.hbm %s4, %s429
          %s431 = sshll.u32 %s430, 4
          %s432 = int_to_ptr.hbm [resolvable:$true] %s431
          %s433 = sshll.u32 %s425, 4
          %s434 = int_to_ptr.vmem [resolvable:$true] %s433
          %439 = dma.hbm_to_vmem [thread:$0]  %s432, 1024, %s434, %s422, 64, 64, 4
        $region56: #{tpu_custom_call.1} parent=43 // pred_fallthru
          _
        // Predicated region
        $region57: #{tpu_custom_call.1} parent=43 // pred_check
          %p440 = pneg %p166
        $region58: #{tpu_custom_call.1} parent=43 // pred_check_branch
          %442 = sbr.rel (%p440) target = $region60
        $region59: #{tpu_custom_call.1} parent=43 // pred_region
          %p443 = scmp.lt.s32.totalorder %s26, 2
          %s444 = scalar_select %p443, %s26, 2
          %s445 = scalar_lea.vmem %s5, %s444
        $region60: #{tpu_custom_call.1} parent=43 // pred_fallthru
          _
        // Predicated region
        $region61: #{tpu_custom_call.1} parent=43 // pred_check
          %p446 = pneg %p192
        $region62: #{tpu_custom_call.1} parent=43 // pred_check_branch
          %448 = sbr.rel (%p446) target = $region64
        $region63: #{tpu_custom_call.1} parent=43 // pred_region
          %p449 = scmp.lt.s32.totalorder %s26, 2
          %s450 = scalar_select %p449, %s26, 2
          %s451 = scalar_lea.vmem %s6, %s450
        $region64: #{tpu_custom_call.1} parent=43 // pred_fallthru
          _
        // Predicated region
        $region65: #{tpu_custom_call.1} parent=43 // pred_check
          %p452 = pneg %p218
        $region66: #{tpu_custom_call.1} parent=43 // pred_check_branch
          %454 = sbr.rel (%p452) target = $region68
        $region67: #{tpu_custom_call.1} parent=43 // pred_region
          %p455 = scmp.lt.s32.totalorder %s26, 2
          %s456 = scalar_select %p455, %s26, 2
          %s457 = scalar_lea.vmem %s7, %s456
        $region68: #{tpu_custom_call.1} parent=43 // pred_fallthru
          _
      $region44: #{tpu_custom_call.1} parent=5 // pred_fallthru
        _
      %p458 = scmp.le.s32.totalorder 1, %s26
      %p459 = scmp.lt.s32.totalorder %s26, 4
      %p460 = pnand %p458, %p459
      %p461 = pneg %p460
      // Predicated region
      $region69: #{tpu_custom_call.1} parent=5 // pred_check
        _
      $region70: #{tpu_custom_call.1} parent=5 // pred_check_branch
        %463 = sbr.rel (%p460) target = $region72
      $region71: #{tpu_custom_call.1} parent=5 // pred_region
        %s464 = ssub.s32 %s26, 1
        %s465 = sand.u32 %s81, 1
        %s466 = scalar_lea.sflag [#allocation4], %s465
        %s467 = sand.u32 %s81, 1
        %s468 = smul.addr %s467, 64
        %s469 = scalar_lea.vmem [#allocation3], %s468
        // Predicated region
        $region73: #{tpu_custom_call.1} parent=71 // pred_check
          %p470 = pneg %p94
        $region74: #{tpu_custom_call.1} parent=71 // pred_check_branch
          %472 = sbr.rel (%p470) target = $region76
        $region75: #{tpu_custom_call.1} parent=71 // pred_region
          %474 = dma.done %s466, 1024
        $region76: #{tpu_custom_call.1} parent=71 // pred_fallthru
          _
        %s475 = sand.u32 %s133, 1
        %s476 = scalar_lea.sflag [#allocation7], %s475
        %s477 = sand.u32 %s133, 1
        %s478 = smul.addr %s477, 64
        %s479 = scalar_lea.vmem [#allocation6], %s478
        // Predicated region
        $region77: #{tpu_custom_call.1} parent=71 // pred_check
          %p480 = pneg %p146
        $region78: #{tpu_custom_call.1} parent=71 // pred_check_branch
          %482 = sbr.rel (%p480) target = $region80
        $region79: #{tpu_custom_call.1} parent=71 // pred_region
          %484 = dma.done %s476, 1024
        $region80: #{tpu_custom_call.1} parent=71 // pred_fallthru
          _
        %p485 = pneg %p47
        %p486 = pneg %p44
        %p487 = pneg %p68
        %p488 = pneg %p65
        %s489 = sand.u32 %s81, 1
        %s490 = scalar_lea.sflag [#allocation4], %s489
        %s491 = sand.u32 %s81, 1
        %s492 = smul.addr %s491, 64
        %s493 = scalar_lea.vmem [#allocation3], %s492
        %p494 = pneg %p94
        %p495 = pneg %p91
        %p496 = scmp.lt.s32.totalorder %s31, 2
        %s497 = scalar_select %p496, %s31, 2
        %s498 = scalar_lea.vmem %s3, %s497
        %p499 = pneg %p120
        %p500 = pneg %p117
        %s501 = sand.u32 %s133, 1
        %s502 = scalar_lea.sflag [#allocation7], %s501
        %s503 = sand.u32 %s133, 1
        %s504 = smul.addr %s503, 64
        %s505 = scalar_lea.vmem [#allocation6], %s504
        %p506 = pneg %p146
        %p507 = pneg %p143
        %p508 = scmp.lt.s32.totalorder %s31, 2
        %s509 = scalar_select %p508, %s31, 2
        %s510 = scalar_lea.vmem %s5, %s509
        %p511 = pneg %p172
        %p512 = pneg %p169
        %p513 = scmp.lt.s32.totalorder %s31, 2
        %s514 = scalar_select %p513, %s31, 2
        %s515 = scalar_lea.vmem %s6, %s514
        %p516 = pneg %p198
        %p517 = pneg %p195
        %p518 = scmp.lt.s32.totalorder %s31, 2
        %s519 = scalar_select %p518, %s31, 2
        %s520 = scalar_lea.vmem %s7, %s519
        %p521 = pneg %p224
        %p522 = pneg %p221
        %p523 = pneg %p245
        %p524 = pneg %p242
        %p525 = pneg %p266
        %p526 = pneg %p263
        %p527 = pneg %p287
        %p528 = pneg %p284
        %p529 = pneg %p308
        %p530 = pneg %p305
        %p531 = pneg %p329
        %p532 = pneg %p326
        %p533 = pneg %p350
        %p534 = pneg %p347
        %p535 = scmp.lt.s32.totalorder %s31, 2
        %s536 = scalar_select %p535, %s31, 2
        %s537 = scalar_lea.vmem %s3, %s536
        %p538 = scmp.lt.s32.totalorder %s31, 2
        %s539 = scalar_select %p538, %s31, 2
        %s540 = scalar_lea.vmem %s5, %s539
        %p541 = scmp.lt.s32.totalorder %s31, 2
        %s542 = scalar_select %p541, %s31, 2
        %s543 = scalar_lea.vmem %s6, %s542
        %p544 = scmp.lt.s32.totalorder %s31, 2
        %s545 = scalar_select %p544, %s31, 2
        %s546 = scalar_lea.vmem %s7, %s545
        %p548 = scmp.eq.s32.totalorder %s31, 0
        // Predicated region
        $region81: #{tpu_custom_call.1} parent=71 // pred_check
          %p549 = pneg %p548
        $region82: #{tpu_custom_call.1} parent=71 // pred_check_branch
          %551 = sbr.rel (%p549) target = $region84
        $region83: #{tpu_custom_call.1} parent=71 // pred_region
          %v552 = vld [vmem:[%s0] sm:$0xff]
          %v553 = vld [vmem:[%s0 + $0x8] sm:$0xff]
          %v554 = vld [vmem:[%s0 + $0x10] sm:$0xff]
          %v555 = vld [vmem:[%s0 + $0x18] sm:$0xff]
          %556 = vst [vmem:[#allocation2] sm:$0xff] %v552
          %557 = vst [vmem:[#allocation2 + $0x8] sm:$0xff] %v553
          %558 = vst [vmem:[#allocation2 + $0x10] sm:$0xff] %v554
          %559 = vst [vmem:[#allocation2 + $0x18] sm:$0xff] %v555
        $region84: #{tpu_custom_call.1} parent=71 // pred_fallthru
          _
        %v560 = vld [vmem:[#allocation2] sm:$0xff]
        %v561 = vld [vmem:[#allocation2 + $0x8] sm:$0xff]
        %v562 = vld [vmem:[#allocation2 + $0x10] sm:$0xff]
        %v563 = vld [vmem:[#allocation2 + $0x18] sm:$0xff]
        %v564 = vld [vmem:[%s1] sm:$0xf]
        %v565 = vld [vmem:[%s1 + $0x4] sm:$0xf]
        %v566 = vld [vmem:[%s1 + $0x8] sm:$0xf]
        %v567 = vld [vmem:[%s1 + $0xc] sm:$0xf]
        %v568 = vpack.c.bf16 %v561, %v560
        %v569 = vpack.c.bf16 %v563, %v562
        %v574 = vunpack.c.l.b16 %v564
        %v575 = vunpack.c.l.b16 %v565
        %v576 = vunpack.c.l.b16 %v566
        %v577 = vunpack.c.l.b16 %v567
        %v578 = vpack.c.b16 %v575, %v574
        %v579 = vpack.c.b16 %v577, %v576
        %vm580 = vcmask 261120
        %v582 = vsel %vm580, %v578, 0
        %v585 = vsel %vm580, %v579, 0
        %587 = vmatpush.bf16.msra.mxu0 0
        %588 = vmatpush.bf16.msra.mxu0 0
        %589 = vmatpush.bf16.msra.mxu0 0
        %590 = vmatpush.bf16.msra.mxu0 0
        %591 = vmatpush.bf16.msra.mxu0 0
        %592 = vmatpush.bf16.msra.mxu0 0
        %593 = vmatpush.bf16.msra.mxu0 %v569
        %594 = vmatpush.bf16.msra.mxu0 %v568
        %595 = vmatmul.bf16.gmra.mxu0 %v582
        %v596 = vpop.f32.mrf.mxu0
        %v597 = vadd.f32 0.0, %v596
        %v598 = vpop.f32.mrf.mxu0
        %v599 = vadd.f32 0.0, %v598
        %600 = vmatmul.bf16.gmra.mxu0 %v585
        %v601 = vpop.f32.mrf.mxu0
        %v602 = vadd.f32 0.0, %v601
        %v603 = vpop.f32.mrf.mxu0
        %v604 = vadd.f32 0.0, %v603
        %605 = vdwg.mxu0
        %v606 = vadd.f32 %v560, %v597
        %v607 = vadd.f32 %v561, %v599
        %v608 = vadd.f32 %v562, %v602
        %v609 = vadd.f32 %v563, %v604
        %v610 = vpack.c.bf16 %v607, %v606
        %v611 = vpack.c.bf16 %v609, %v608
        %v612 = vld [vmem:[%s469] sm:$0xf]
        %v613 = vld [vmem:[%s469 + $0x4] sm:$0xf]
        %v614 = vld [vmem:[%s469 + $0x8] sm:$0xf]
        %v615 = vld [vmem:[%s469 + $0xc] sm:$0xf]
        %v616 = vld [vmem:[%s469 + $0x10] sm:$0xf]
        %v617 = vld [vmem:[%s469 + $0x14] sm:$0xf]
        %v618 = vld [vmem:[%s469 + $0x18] sm:$0xf]
        %v619 = vld [vmem:[%s469 + $0x1c] sm:$0xf]
        %v620 = vld [vmem:[%s469 + $0x20] sm:$0xf]
        %v621 = vld [vmem:[%s469 + $0x24] sm:$0xf]
        %v622 = vld [vmem:[%s469 + $0x28] sm:$0xf]
        %v623 = vld [vmem:[%s469 + $0x2c] sm:$0xf]
        %v624 = vld [vmem:[%s469 + $0x30] sm:$0xf]
        %v625 = vld [vmem:[%s469 + $0x34] sm:$0xf]
        %v626 = vld [vmem:[%s469 + $0x38] sm:$0xf]
        %v627 = vld [vmem:[%s469 + $0x3c] sm:$0xf]
        %v628 = vld [vmem:[%s537] sm:$0x1]
        %v630 = vperm.slane %v628, 0
        %v648 = vunpack.c.l.b16 %v612
        %v649 = vunpack.c.l.b16 %v613
        %v650 = vunpack.c.l.b16 %v614
        %v651 = vunpack.c.l.b16 %v615
        %v652 = vunpack.c.l.b16 %v616
        %v653 = vunpack.c.l.b16 %v617
        %v654 = vunpack.c.l.b16 %v618
        %v655 = vunpack.c.l.b16 %v619
        %v656 = vunpack.c.l.b16 %v620
        %v657 = vunpack.c.l.b16 %v621
        %v658 = vunpack.c.l.b16 %v622
        %v659 = vunpack.c.l.b16 %v623
        %v660 = vunpack.c.l.b16 %v624
        %v661 = vunpack.c.l.b16 %v625
        %v662 = vunpack.c.l.b16 %v626
        %v663 = vunpack.c.l.b16 %v627
        %v664 = vpack.c.b16 %v649, %v648
        %v665 = vpack.c.b16 %v651, %v650
        %v666 = vpack.c.b16 %v653, %v652
        %v667 = vpack.c.b16 %v655, %v654
        %v668 = vpack.c.b16 %v657, %v656
        %v669 = vpack.c.b16 %v659, %v658
        %v670 = vpack.c.b16 %v661, %v660
        %v671 = vpack.c.b16 %v663, %v662
        %680 = vmatpush.bf16.msra.mxu0 %v671
        %681 = vmatpush.bf16.msra.mxu0 %v670
        %682 = vmatpush.bf16.msra.mxu0 %v669
        %683 = vmatpush.bf16.msra.mxu0 %v668
        %684 = vmatpush.bf16.msra.mxu0 %v667
        %685 = vmatpush.bf16.msra.mxu0 %v666
        %686 = vmatpush.bf16.msra.mxu0 %v665
        %687 = vmatpush.bf16.msra.mxu0 %v664
        %688 = vmatmul.bf16.gmra.mxu0 %v610
        %v689 = vpop.f32.mrf.mxu0
        %v690 = vadd.f32 %v630, %v689
        %v691 = vpop.f32.mrf.mxu0
        %v692 = vadd.f32 %v630, %v691
        %693 = vmatmul.bf16.gmra.mxu0 %v611
        %v694 = vpop.f32.mrf.mxu0
        %v695 = vadd.f32 %v630, %v694
        %v696 = vpop.f32.mrf.mxu0
        %v697 = vadd.f32 %v630, %v696
        %698 = vdwg.mxu0
        %v699 = vmax.f32 %v690, 0.0
        %v700 = vmax.f32 %v692, 0.0
        %v701 = vmax.f32 %v695, 0.0
        %v702 = vmax.f32 %v697, 0.0
        %v703 = vpack.c.bf16 %v700, %v699
        %v704 = vpack.c.bf16 %v702, %v701
        %v705 = vld [vmem:[%s479] sm:$0xf]
        %v706 = vld [vmem:[%s479 + $0x4] sm:$0xf]
        %v707 = vld [vmem:[%s479 + $0x8] sm:$0xf]
        %v708 = vld [vmem:[%s479 + $0xc] sm:$0xf]
        %v709 = vld [vmem:[%s479 + $0x10] sm:$0xf]
        %v710 = vld [vmem:[%s479 + $0x14] sm:$0xf]
        %v711 = vld [vmem:[%s479 + $0x18] sm:$0xf]
        %v712 = vld [vmem:[%s479 + $0x1c] sm:$0xf]
        %v713 = vld [vmem:[%s479 + $0x20] sm:$0xf]
        %v714 = vld [vmem:[%s479 + $0x24] sm:$0xf]
        %v715 = vld [vmem:[%s479 + $0x28] sm:$0xf]
        %v716 = vld [vmem:[%s479 + $0x2c] sm:$0xf]
        %v717 = vld [vmem:[%s479 + $0x30] sm:$0xf]
        %v718 = vld [vmem:[%s479 + $0x34] sm:$0xf]
        %v719 = vld [vmem:[%s479 + $0x38] sm:$0xf]
        %v720 = vld [vmem:[%s479 + $0x3c] sm:$0xf]
        %v721 = vld [vmem:[%s540] sm:$0x1]
        %v723 = vperm.slane %v721, 0
        %v741 = vunpack.c.l.b16 %v705
        %v742 = vunpack.c.l.b16 %v706
        %v743 = vunpack.c.l.b16 %v707
        %v744 = vunpack.c.l.b16 %v708
        %v745 = vunpack.c.l.b16 %v709
        %v746 = vunpack.c.l.b16 %v710
        %v747 = vunpack.c.l.b16 %v711
        %v748 = vunpack.c.l.b16 %v712
        %v749 = vunpack.c.l.b16 %v713
        %v750 = vunpack.c.l.b16 %v714
        %v751 = vunpack.c.l.b16 %v715
        %v752 = vunpack.c.l.b16 %v716
        %v753 = vunpack.c.l.b16 %v717
        %v754 = vunpack.c.l.b16 %v718
        %v755 = vunpack.c.l.b16 %v719
        %v756 = vunpack.c.l.b16 %v720
        %v757 = vpack.c.b16 %v742, %v741
        %v758 = vpack.c.b16 %v744, %v743
        %v759 = vpack.c.b16 %v746, %v745
        %v760 = vpack.c.b16 %v748, %v747
        %v761 = vpack.c.b16 %v750, %v749
        %v762 = vpack.c.b16 %v752, %v751
        %v763 = vpack.c.b16 %v754, %v753
        %v764 = vpack.c.b16 %v756, %v755
        %773 = vmatpush.bf16.msra.mxu0 %v764
        %774 = vmatpush.bf16.msra.mxu0 %v763
        %775 = vmatpush.bf16.msra.mxu0 %v762
        %776 = vmatpush.bf16.msra.mxu0 %v761
        %777 = vmatpush.bf16.msra.mxu0 %v760
        %778 = vmatpush.bf16.msra.mxu0 %v759
        %779 = vmatpush.bf16.msra.mxu0 %v758
        %780 = vmatpush.bf16.msra.mxu0 %v757
        %781 = vmatmul.bf16.gmra.mxu0 %v703
        %v782 = vpop.f32.mrf.mxu0
        %v783 = vadd.f32 %v723, %v782
        %v784 = vpop.f32.mrf.mxu0
        %v785 = vadd.f32 %v723, %v784
        %786 = vmatmul.bf16.gmra.mxu0 %v704
        %v787 = vpop.f32.mrf.mxu0
        %v788 = vadd.f32 %v723, %v787
        %v789 = vpop.f32.mrf.mxu0
        %v790 = vadd.f32 %v723, %v789
        %791 = vdwg.mxu0
        %v792 = vadd.f32 %v783, %v785
        %v793 = vadd.f32 %v792, %v788
        %v794 = vadd.f32 %v793, %v790
        %v795 = vrot.slane %v794, 4
        %v796 = vadd.f32 %v794, %v795
        %v797 = vrot.slane %v796, 2
        %v798 = vadd.f32 %v796, %v797
        %v799 = vrot.slane %v798, 1
        %v800 = vadd.f32 %v798, %v799
        %v801 = vrcp.pop 32.0
        %v802 = vmul.f32 32.0, %v801
        %v803 = vsub.f32 1.0, %v802
        %v804 = vmul.f32 %v801, %v803
        %v805 = vadd.f32 %v801, %v804
        %vm806 = vweird.f32 %v801
        %v807 = vsel %vm806, %v801, %v805
        %v808 = vmul.f32 %v800, %v807
        %v809 = vmul.f32 %v783, %v783
        %v810 = vmul.f32 %v785, %v785
        %v811 = vmul.f32 %v788, %v788
        %v812 = vmul.f32 %v790, %v790
        %v813 = vadd.f32 %v809, %v810
        %v814 = vadd.f32 %v813, %v811
        %v815 = vadd.f32 %v814, %v812
        %v816 = vrot.slane %v815, 4
        %v817 = vadd.f32 %v815, %v816
        %v818 = vrot.slane %v817, 2
        %v819 = vadd.f32 %v817, %v818
        %v820 = vrot.slane %v819, 1
        %v821 = vadd.f32 %v819, %v820
        %v822 = vmul.f32 %v821, %v807
        %v823 = vmul.f32 %v808, %v808
        %v824 = vsub.f32 %v822, %v823
        %v825 = vadd.f32 %v824, 1e-05
        %v826 = vrsqrt.pop %v825
        %v827 = vmul.f32 %v826, %v825
        %v828 = vmul.f32 %v827, %v826
        %v829 = vmul.f32 0.5, %v828
        %v830 = vsub.f32 1.5, %v829
        %v831 = vmul.f32 %v826, %v830
        %vm832 = vweird.f32 %v825
        %vm833 = vweird.f32 %v826
        %vm834 = vmor %vm832, %vm833
        %v835 = vsel %vm834, %v826, %v831
        %v836 = vld [vmem:[%s543] sm:$0x1]
        %v837 = vmul.f32 %v835, %v836
        %v838 = vld [vmem:[%s546] sm:$0x1]
        %v839 = vmul.f32 %v808, %v837
        %v840 = vsub.f32 %v838, %v839
        %v841 = vperm.slane %v837, 0
        %v842 = vmul.f32 %v783, %v841
        %v843 = vmul.f32 %v785, %v841
        %v844 = vmul.f32 %v788, %v841
        %v845 = vmul.f32 %v790, %v841
        %v847 = vperm.slane %v840, 0
        %v849 = vadd.f32 %v842, %v847
        %v850 = vadd.f32 %v843, %v847
        %v851 = vadd.f32 %v844, %v847
        %v852 = vadd.f32 %v845, %v847
        %v853 = vmax.f32 %v849, 0.0
        %v854 = vmax.f32 %v850, 0.0
        %v855 = vmax.f32 %v851, 0.0
        %v856 = vmax.f32 %v852, 0.0
        // Predicated region
        $region85: #{tpu_custom_call.1} parent=71 // pred_check
          %p857 = pneg %p548
        $region86: #{tpu_custom_call.1} parent=71 // pred_check_branch
          %859 = sbr.rel (%p857) target = $region88
        $region87: #{tpu_custom_call.1} parent=71 // pred_region
          %860 = vst [vmem:[#allocation2] sm:$0xff] %v853
          %861 = vst [vmem:[#allocation2 + $0x8] sm:$0xff] %v854
          %862 = vst [vmem:[#allocation2 + $0x10] sm:$0xff] %v855
          %863 = vst [vmem:[#allocation2 + $0x18] sm:$0xff] %v856
        $region88: #{tpu_custom_call.1} parent=71 // pred_fallthru
          _
        %p864 = scmp.gt.s32.totalorder %s31, 0
        // Predicated region
        $region89: #{tpu_custom_call.1} parent=71 // pred_check
          %p865 = pneg %p864
        $region90: #{tpu_custom_call.1} parent=71 // pred_check_branch
          %867 = sbr.rel (%p865) target = $region92
        $region91: #{tpu_custom_call.1} parent=71 // pred_region
          %v868 = vadd.f32 %v560, %v853
          %v869 = vadd.f32 %v561, %v854
          %v870 = vadd.f32 %v562, %v855
          %v871 = vadd.f32 %v563, %v856
          %872 = vst [vmem:[#allocation2] sm:$0xff] %v868
          %873 = vst [vmem:[#allocation2 + $0x8] sm:$0xff] %v869
          %874 = vst [vmem:[#allocation2 + $0x10] sm:$0xff] %v870
          %875 = vst [vmem:[#allocation2 + $0x18] sm:$0xff] %v871
        $region92: #{tpu_custom_call.1} parent=71 // pred_fallthru
          _
        %p876 = scmp.eq.s32.totalorder %s31, 2
        // Predicated region
        $region93: #{tpu_custom_call.1} parent=71 // pred_check
          %p877 = pneg %p876
        $region94: #{tpu_custom_call.1} parent=71 // pred_check_branch
          %879 = sbr.rel (%p877) target = $region96
        $region95: #{tpu_custom_call.1} parent=71 // pred_region
          %v880 = vld [vmem:[#allocation2] sm:$0xff]
          %v881 = vld [vmem:[#allocation2 + $0x8] sm:$0xff]
          %v882 = vld [vmem:[#allocation2 + $0x10] sm:$0xff]
          %v883 = vld [vmem:[#allocation2 + $0x18] sm:$0xff]
          %v884 = vpack.c.bf16 %v881, %v880
          %v885 = vpack.c.bf16 %v883, %v882
          %v886 = vld [vmem:[%s8] sm:$0x1]
          %v888 = vsel %vm580, %v886, 0
          %890 = vmatpush.bf16.msra.mxu0 0
          %891 = vmatpush.bf16.msra.mxu0 0
          %892 = vmatpush.bf16.msra.mxu0 0
          %893 = vmatpush.bf16.msra.mxu0 0
          %894 = vmatpush.bf16.msra.mxu0 0
          %895 = vmatpush.bf16.msra.mxu0 0
          %896 = vmatpush.bf16.msra.mxu0 %v885
          %897 = vmatpush.bf16.msra.mxu0 %v884
          %898 = vmatmul.bf16.gmra.mxu0 %v888
          %v899 = vpop.f32.mrf.mxu0
          %v900 = vadd.f32 0.0, %v899
          %v901 = vpop.f32.mrf.mxu0
          %902 = vdwg.mxu0
          %v903 = vpack.c.bf16 %v900, %v900
          %v904 = vld [vmem:[%s9] sm:$0xf]
          %v905 = vld [vmem:[%s9 + $0x4] sm:$0xf]
          %v906 = vld [vmem:[%s9 + $0x8] sm:$0xf]
          %v907 = vld [vmem:[%s9 + $0xc] sm:$0xf]
          %v908 = vld [vmem:[%s9 + $0x10] sm:$0xf]
          %v909 = vld [vmem:[%s9 + $0x14] sm:$0xf]
          %v910 = vld [vmem:[%s9 + $0x18] sm:$0xf]
          %v911 = vld [vmem:[%s9 + $0x1c] sm:$0xf]
          %v912 = vld [vmem:[%s9 + $0x20] sm:$0xf]
          %v913 = vld [vmem:[%s9 + $0x24] sm:$0xf]
          %v914 = vld [vmem:[%s9 + $0x28] sm:$0xf]
          %v915 = vld [vmem:[%s9 + $0x2c] sm:$0xf]
          %v916 = vld [vmem:[%s9 + $0x30] sm:$0xf]
          %v917 = vld [vmem:[%s9 + $0x34] sm:$0xf]
          %v918 = vld [vmem:[%s9 + $0x38] sm:$0xf]
          %v919 = vld [vmem:[%s9 + $0x3c] sm:$0xf]
          %v920 = vld [vmem:[%s10] sm:$0x1]
          %v922 = vperm.slane %v920, 0
          %v940 = vunpack.c.l.b16 %v904
          %v941 = vunpack.c.l.b16 %v905
          %v942 = vunpack.c.l.b16 %v906
          %v943 = vunpack.c.l.b16 %v907
          %v944 = vunpack.c.l.b16 %v908
          %v945 = vunpack.c.l.b16 %v909
          %v946 = vunpack.c.l.b16 %v910
          %v947 = vunpack.c.l.b16 %v911
          %v948 = vunpack.c.l.b16 %v912
          %v949 = vunpack.c.l.b16 %v913
          %v950 = vunpack.c.l.b16 %v914
          %v951 = vunpack.c.l.b16 %v915
          %v952 = vunpack.c.l.b16 %v916
          %v953 = vunpack.c.l.b16 %v917
          %v954 = vunpack.c.l.b16 %v918
          %v955 = vunpack.c.l.b16 %v919
          %v956 = vpack.c.b16 %v941, %v940
          %v957 = vpack.c.b16 %v943, %v942
          %v958 = vpack.c.b16 %v945, %v944
          %v959 = vpack.c.b16 %v947, %v946
          %v960 = vpack.c.b16 %v949, %v948
          %v961 = vpack.c.b16 %v951, %v950
          %v962 = vpack.c.b16 %v953, %v952
          %v963 = vpack.c.b16 %v955, %v954
          %972 = vmatpush.bf16.msra.mxu0 %v963
          %973 = vmatpush.bf16.msra.mxu0 %v962
          %974 = vmatpush.bf16.msra.mxu0 %v961
          %975 = vmatpush.bf16.msra.mxu0 %v960
          %976 = vmatpush.bf16.msra.mxu0 %v959
          %977 = vmatpush.bf16.msra.mxu0 %v958
          %978 = vmatpush.bf16.msra.mxu0 %v957
          %979 = vmatpush.bf16.msra.mxu0 %v956
          %980 = vmatmul.bf16.gmra.mxu0 %v903
          %v981 = vpop.f32.mrf.mxu0
          %v982 = vadd.f32 %v922, %v981
          %v983 = vpop.f32.mrf.mxu0
          %984 = vdwg.mxu0
          %v985 = vmax.f32 %v982, 0.0
          %v986 = vpack.c.bf16 %v985, %v985
          %v987 = vld [vmem:[%s11] sm:$0xf]
          %v988 = vld [vmem:[%s11 + $0x4] sm:$0xf]
          %v989 = vld [vmem:[%s12] sm:$0x1]
          %v991 = vperm.slane %v989, 0
          %v995 = vunpack.c.l.b16 %v987
          %v996 = vunpack.c.l.b16 %v988
          %v997 = vpack.c.b16 %v996, %v995
          %vm999 = vcmask 130048
          %v1001 = vsel %vm999, %v986, 0
          %1003 = vmatpush.bf16.msra.mxu0 0
          %1004 = vmatpush.bf16.msra.mxu0 0
          %1005 = vmatpush.bf16.msra.mxu0 0
          %1006 = vmatpush.bf16.msra.mxu0 0
          %1007 = vmatpush.bf16.msra.mxu0 0
          %1008 = vmatpush.bf16.msra.mxu0 0
          %1009 = vmatpush.bf16.msra.mxu0 0
          %1010 = vmatpush.bf16.msra.mxu0 %v997
          %1011 = vmatmul.bf16.gmra.mxu0 %v1001
          %v1012 = vpop.f32.mrf.mxu0
          %v1013 = vadd.f32 %v991, %v1012
          %v1014 = vpop.f32.mrf.mxu0
          %1015 = vdwg.mxu0
          %v1016 = vmax.f32 %v1013, 0.0
          %vm1017 = vcmask 58368
          %1018 = vst.msk [vmem:[#allocation8] sm:$0x3] %vm1017, %v1016
        $region96: #{tpu_custom_call.1} parent=71 // pred_fallthru
          _
        // Predicated region
        $region97: #{tpu_custom_call.1} parent=71 // pred_check
          %p1019 = pneg %p347
        $region98: #{tpu_custom_call.1} parent=71 // pred_check_branch
          %1021 = sbr.rel (%p1019) target = $region100
        $region99: #{tpu_custom_call.1} parent=71 // pred_region
          %1023 = vsyncadd [#allocation5], 0
          %s1025 = sshll.u32 [#allocation8], 4
          %s1026 = int_to_ptr.vmem [resolvable:$true] %s1025
          %s1027 = sshll.u32 %s13, 4
          %s1028 = int_to_ptr.hbm [resolvable:$true] %s1027
          %1030 = dma.vmem_to_hbm [thread:$0]  %s1026, 32, %s1028, [#allocation5]
        $region100: #{tpu_custom_call.1} parent=71 // pred_fallthru
          _
        // Predicated region
        $region101: #{tpu_custom_call.1} parent=71 // pred_check
          %p1031 = pneg %p347
        $region102: #{tpu_custom_call.1} parent=71 // pred_check_branch
          %1033 = sbr.rel (%p1031) target = $region104
        $region103: #{tpu_custom_call.1} parent=71 // pred_region
          %1035 = dma.done [#allocation5], 32
        $region104: #{tpu_custom_call.1} parent=71 // pred_fallthru
          _
      $region72: #{tpu_custom_call.1} parent=5 // pred_fallthru
        _
      %p1036 = scmp.le.s32.totalorder 2, %s26
      // Predicated region
      $region105: #{tpu_custom_call.1} parent=5 // pred_check
        %p1037 = pneg %p1036
      $region106: #{tpu_custom_call.1} parent=5 // pred_check_branch
        %1039 = sbr.rel (%p1037) target = $region108
      $region107: #{tpu_custom_call.1} parent=5 // pred_region
        %s1040 = ssub.s32 %s26, 2
      $region108: #{tpu_custom_call.1} parent=5 // pred_fallthru
        _
    $region6: #{tpu_custom_call.1} parent=1 // loop_footer
      %s30 = sadd.s32 1, %s26
    $region7: #{tpu_custom_call.1} parent=1 // loop_footer_branch
      %25 = sbr.rel target = $region3
    $region8: #{tpu_custom_call.1} parent=1 // loop_exit
      _
    %1041 = vsyncpa [#allocation4], 1
    %s1042 = scalar_lea.sflag [#allocation4], 1
    %1043 = vsyncpa %s1042, 1
    %1044 = vsyncpa [#allocation7], 1
    %s1045 = scalar_lea.sflag [#allocation7], 1
    %1046 = vsyncpa %s1045, 1
    %1047 = vsyncpa [#allocation5], 1
    %s1048 = scalar_lea.sflag [#allocation5], 1
    %1049 = vsyncpa %s1048, 1

</llo_original>
